<compile_context>
chip_gen: v7x
topology: tpu7x:2x2x1
jax: 0.10.0
libtpu: 0.0.40
codegen_flags: <defaults>
</compile_context>

<pallas_src>
import jax
import jax.numpy as jnp
from jax.experimental import pallas as pl
from jax.experimental.pallas import tpu as pltpu


def _round_up(x, m):
    return ((x + m - 1) // m) * m


def _policy_kernel(x_ref, gd_ref, w1_ref, b1_ref, wd_ref, bd_ref, y1_ref):
    # net: Linear -> ReLU  (MXU, f32 accumulation; bias broadcast along sublanes)
    h = jnp.dot(x_ref[...], w1_ref[...],
                preferred_element_type=jnp.float32) + b1_ref[...]
    h = jnp.maximum(h, 0.0)
    # folded (Linear(h,a/2) ∘ all binary heads ∘ 1/temp) logit-difference matmul
    d = (jnp.dot(h, wd_ref[...], preferred_element_type=jnp.float32)
         + bd_ref[...] + gd_ref[...])
    # binary Gumbel-softmax == sigmoid of the perturbed logit difference
    y1_ref[...] = 1.0 / (1.0 + jnp.exp(-d))


def init_raw_params(key, s_dim, h_dim, a_dim):
    """PyTorch-layout parameters (weights [out, in]), uniform Linear-style init."""
    a_half = a_dim // 2
    ks = jax.random.split(key, 6)

    def lin(kw, kb, fan_out, fan_in):
        bound = 1.0 / jnp.sqrt(jnp.float32(fan_in))
        w = jax.random.uniform(kw, (fan_out, fan_in), jnp.float32, -bound, bound)
        b = jax.random.uniform(kb, (fan_out,), jnp.float32, -bound, bound)
        return w, b

    w1, b1 = lin(ks[0], ks[1], h_dim, s_dim)          # Linear(s_dim, h_dim)
    w2, b2 = lin(ks[2], ks[3], a_half, h_dim)         # Linear(h_dim, a_dim // 2)
    bound = 1.0 / jnp.sqrt(jnp.float32(a_half))
    wh = jax.random.uniform(ks[4], (a_dim, 2, a_half), jnp.float32, -bound, bound)
    bh = jax.random.uniform(ks[5], (a_dim, 2), jnp.float32, -bound, bound)
    return dict(w1=w1, b1=b1, w2=w2, b2=b2, wh=wh, bh=bh)


def pack_params(raw, *, gumbel_temp, lane=128):
    """Offline folding: transpose to [in, out], fold Linear2 + all binary heads
    into one logit-difference weight/bias (scaled by 1/temp), zero-pad the
    hidden dim to the 128-lane width.  Tile-size independent (biases [1, N])."""
    hi = jax.lax.Precision.HIGHEST
    h_dim, s_dim = raw["w1"].shape
    a_dim = raw["wh"].shape[0]
    hp = _round_up(h_dim, lane)
    inv_temp = 1.0 / float(gumbel_temp)

    w1 = jnp.zeros((s_dim, hp), jnp.float32).at[:, :h_dim].set(raw["w1"].T)
    b1 = jnp.zeros((1, hp), jnp.float32).at[0, :h_dim].set(raw["b1"])

    # per-head class1-minus-class0 weights/biases
    wd_head = (raw["wh"][:, 1, :] - raw["wh"][:, 0, :]).T            # [a_half, a_dim]
    bd_head = raw["bh"][:, 1] - raw["bh"][:, 0]                      # [a_dim]
    # fold Linear(h_dim, a_half) through the heads:  d = h @ wd + bd
    wd_full = jnp.dot(raw["w2"].T, wd_head, precision=hi)            # [h_dim, a_dim]
    bd_full = jnp.dot(raw["b2"], wd_head, precision=hi) + bd_head    # [a_dim]

    wd = (jnp.zeros((hp, a_dim), jnp.float32).at[:h_dim].set(wd_full)) * inv_temp
    bd = (bd_full * inv_temp).reshape(1, a_dim)
    return dict(w1=w1, b1=b1, wd=wd, bd=bd)


def multidiscrete_policy_forward(s, gumbel_diff, packed, *, block_b=None):
    """s: [B, s_dim] f32.  gumbel_diff: [B, a_dim] f32 — (g_class1 - g_class0)/temp.
    Returns (action_rep [B, 2*a_dim] hard one-hots, probs [B, 2*a_dim] soft),
    both in the PyTorch per-head-interleaved concatenation order."""
    B, s_dim = s.shape
    hp = packed["w1"].shape[1]
    a_dim = packed["wd"].shape[1]

    if block_b is None:
        # Big tiles amortize per-step overhead; >= 2 grid steps when possible so
        # the batch axis can shard across v7x's two TensorCores.
        block_b = min(2048, _round_up(max((B + 1) // 2, 8), 8))
    bp = _round_up(B, block_b)

    x, gd = s, gumbel_diff
    if bp != B:
        x = jnp.pad(x, ((0, bp - B), (0, 0)))
        gd = jnp.pad(gd, ((0, bp - B), (0, 0)))

    row = lambda i: (i, 0)                   # batch-tiled arrays
    rep = lambda i: (0, 0)                   # VMEM-resident weights/biases

    y1 = pl.pallas_call(
        _policy_kernel,
        out_shape=jax.ShapeDtypeStruct((bp, a_dim), jnp.float32),
        grid=(bp // block_b,),
        in_specs=[
            pl.BlockSpec((block_b, s_dim), row),    # state tile
            pl.BlockSpec((block_b, a_dim), row),    # pre-scaled gumbel-diff noise
            pl.BlockSpec((s_dim, hp), rep),         # w1
            pl.BlockSpec((1, hp), rep),             # b1 (broadcast in-kernel)
            pl.BlockSpec((hp, a_dim), rep),         # folded logit-diff weights
            pl.BlockSpec((1, a_dim), rep),          # folded logit-diff bias
        ],
        out_specs=pl.BlockSpec((block_b, a_dim), row),
        compiler_params=pltpu.CompilerParams(
            dimension_semantics=("parallel",)),     # shards batch grid on v7x
    )(x, gd, packed["w1"], packed["b1"], packed["wd"], packed["bd"])

    y1 = y1[:B]                                     # [B, a_dim] p(class1)
    y0 = 1.0 - y1
    # One fused XLA pass builds both interleaved outputs (PyTorch cat order).
    probs = jnp.stack([y0, y1], axis=-1).reshape(B, 2 * a_dim)
    action_rep = jnp.stack([y0 >= y1, y1 >= y0],
                           axis=-1).astype(jnp.float32).reshape(B, 2 * a_dim)
    return action_rep, probs


def _reference_folded(s, gd, packed):
    """Pure-JAX reference of the folded f32 math the kernel runs."""
    h = jnp.maximum(s @ packed["w1"] + packed["b1"], 0.0)
    d = h @ packed["wd"] + packed["bd"] + gd
    return 1.0 / (1.0 + jnp.exp(-d))


def _reference_module(s, gumbel, raw, *, gumbel_temp):
    """Pure-JAX re-implementation of the un-fused PyTorch forward."""
    B = s.shape[0]
    a_dim = raw["wh"].shape[0]
    h = jnp.maximum(s @ raw["w1"].T + raw["b1"], 0.0)
    aw = h @ raw["w2"].T + raw["b2"]
    logits = jnp.einsum("ba,kca->bkc", aw, raw["wh"]) + raw["bh"]    # [B, a_dim, 2]
    z = (logits + gumbel) / gumbel_temp
    y = jax.nn.softmax(z, axis=-1)
    hard = (y == y.max(-1, keepdims=True)).astype(jnp.float32)
    return hard.reshape(B, 2 * a_dim), y.reshape(B, 2 * a_dim)


if __name__ == "__main__":
    # a_dim binary heads -> action_rep has 2*a_dim columns.
    B, s_dim, h_dim, a_dim = 256, 16, 32, 16
    gumbel_temp = 0.8

    key = jax.random.PRNGKey(0)
    k_s, k_p, k_g = jax.random.split(key, 3)
    s = jax.random.normal(k_s, (B, s_dim), jnp.float32)
    raw = init_raw_params(k_p, s_dim, h_dim, a_dim)
    packed = pack_params(raw, gumbel_temp=gumbel_temp)

    # Gumbel noise sampled wrapper-side (deterministic, testable); only the
    # per-head class-difference (pre-scaled by 1/temp) is streamed to the kernel.
    u = jax.random.uniform(k_g, (B, a_dim, 2), jnp.float32, minval=1e-8, maxval=1.0)
    gumbel = -jnp.log(-jnp.log(u))                                   # [B, a_dim, 2]
    gd = (gumbel[..., 1] - gumbel[..., 0]) * (1.0 / gumbel_temp)     # [B, a_dim]

    action_rep, probs = multidiscrete_policy_forward(s, gd, packed)
    jax.block_until_ready((action_rep, probs))

    # (a) kernel vs. its folded f32 reference (same math as the kernel).
    y1_ref = _reference_folded(s, gd, packed)
    probs_folded = jnp.stack([1.0 - y1_ref, y1_ref], axis=-1).reshape(B, 2 * a_dim)
    assert jnp.allclose(probs, probs_folded, atol=5e-3, rtol=0)

    # (b) kernel vs. the un-fused module math (validates the offline folding).
    ref_hard, ref_soft = _reference_module(s, gumbel, raw, gumbel_temp=gumbel_temp)
    assert action_rep.shape == (B, 2 * a_dim) and probs.shape == (B, 2 * a_dim)
    # action_rep is a concatenation of per-head one-hots.
    assert bool(jnp.all((action_rep == 0.0) | (action_rep == 1.0)))
    assert bool(jnp.all(action_rep.reshape(B, a_dim, 2).sum(-1) >= 1.0))
    assert jnp.allclose(probs, ref_soft, atol=2e-2, rtol=0)
    # hard one-hots match wherever the reference is away from the 0.5 boundary.
    margin = jnp.abs(ref_soft[:, 1::2] - 0.5)                        # [B, a_dim]
    confident = jnp.repeat(margin > 2e-2, 2, axis=1)                 # [B, 2*a_dim]
    assert bool(jnp.all(jnp.where(confident, action_rep == ref_hard, True)))
    print("KERNEL_OK")
</pallas_src>

<mosaic_0001>
module attributes {stable_mosaic.version = 11 : i64} {
  func.func @_policy_kernel(%arg0: i32, %arg1: memref<128x16xf32, #tpu.memory_space<vmem>>, %arg2: memref<128x16xf32, #tpu.memory_space<vmem>>, %arg3: memref<16x128xf32, #tpu.memory_space<vmem>>, %arg4: memref<1x128xf32, #tpu.memory_space<vmem>>, %arg5: memref<128x16xf32, #tpu.memory_space<vmem>>, %arg6: memref<1x16xf32, #tpu.memory_space<vmem>>, %arg7: memref<128x16xf32, #tpu.memory_space<vmem>>) attributes {dimension_semantics = [#tpu.dimension_semantics<parallel>], iteration_bounds = array<i64: 2>, scalar_prefetch = 0 : i64, scratch_operands = 0 : i64, tpu.core_type = #tpu.core_type<tc>, window_params = [{transform_indices = @transform_0, window_bounds = array<i64: 128, 16>}, {transform_indices = @transform_1, window_bounds = array<i64: 128, 16>}, {pipeline_mode = #tpu.pipeline_mode<synchronous>, transform_indices = @transform_2, window_bounds = array<i64: 16, 128>}, {pipeline_mode = #tpu.pipeline_mode<synchronous>, transform_indices = @transform_3, window_bounds = array<i64: 1, 128>}, {pipeline_mode = #tpu.pipeline_mode<synchronous>, transform_indices = @transform_4, window_bounds = array<i64: 128, 16>}, {pipeline_mode = #tpu.pipeline_mode<synchronous>, transform_indices = @transform_5, window_bounds = array<i64: 1, 16>}, {transform_indices = @transform_6, window_bounds = array<i64: 128, 16>}]} {
    %c0 = arith.constant 0 : index
    %c0_0 = arith.constant 0 : index
    %0 = vector.load %arg1[%c0, %c0_0] : memref<128x16xf32, #tpu.memory_space<vmem>>, vector<128x16xf32>
    %c0_1 = arith.constant 0 : index
    %c0_2 = arith.constant 0 : index
    %1 = vector.load %arg3[%c0_1, %c0_2] : memref<16x128xf32, #tpu.memory_space<vmem>>, vector<16x128xf32>
    %cst = arith.constant dense<0.000000e+00> : vector<128x128xf32>
    %2 = tpu.matmul %0, %1, %cst {dimension_numbers = #tpu.dot_dimension_numbers<[1], [0], [0], [1], [0, 0, 1, 1], [], []>} : vector<128x16xf32>, vector<16x128xf32>, vector<128x128xf32> -> vector<128x128xf32>
    %c0_3 = arith.constant 0 : index
    %c0_4 = arith.constant 0 : index
    %3 = vector.load %arg4[%c0_3, %c0_4] : memref<1x128xf32, #tpu.memory_space<vmem>>, vector<1x128xf32>
    %4 = vector.broadcast %3 : vector<1x128xf32> to vector<128x128xf32>
    %5 = arith.addf %2, %4 : vector<128x128xf32>
    %cst_5 = arith.constant 0.000000e+00 : f32
    %6 = vector.broadcast %cst_5 : f32 to vector<128x128xf32>
    %7 = arith.maximumf %5, %6 : vector<128x128xf32>
    %c0_6 = arith.constant 0 : index
    %c0_7 = arith.constant 0 : index
    %8 = vector.load %arg5[%c0_6, %c0_7] : memref<128x16xf32, #tpu.memory_space<vmem>>, vector<128x16xf32>
    %cst_8 = arith.constant dense<0.000000e+00> : vector<128x16xf32>
    %9 = tpu.matmul %7, %8, %cst_8 {dimension_numbers = #tpu.dot_dimension_numbers<[1], [0], [0], [1], [0, 0, 1, 1], [], []>} : vector<128x128xf32>, vector<128x16xf32>, vector<128x16xf32> -> vector<128x16xf32>
    %c0_9 = arith.constant 0 : index
    %c0_10 = arith.constant 0 : index
    %10 = vector.load %arg6[%c0_9, %c0_10] : memref<1x16xf32, #tpu.memory_space<vmem>>, vector<1x16xf32>
    %11 = vector.broadcast %10 : vector<1x16xf32> to vector<128x16xf32>
    %12 = arith.addf %9, %11 : vector<128x16xf32>
    %c0_11 = arith.constant 0 : index
    %c0_12 = arith.constant 0 : index
    %13 = vector.load %arg2[%c0_11, %c0_12] : memref<128x16xf32, #tpu.memory_space<vmem>>, vector<128x16xf32>
    %14 = arith.addf %12, %13 : vector<128x16xf32>
    %cst_13 = arith.constant 0.000000e+00 : f32
    %15 = vector.broadcast %cst_13 : f32 to vector<128x16xf32>
    %16 = arith.subf %15, %14 : vector<128x16xf32>
    %17 = math.exp %16 : vector<128x16xf32>
    %cst_14 = arith.constant 1.000000e+00 : f32
    %18 = vector.broadcast %cst_14 : f32 to vector<128x16xf32>
    %19 = arith.addf %18, %17 : vector<128x16xf32>
    %cst_15 = arith.constant 1.000000e+00 : f32
    %20 = vector.broadcast %cst_15 : f32 to vector<128x16xf32>
    %21 = arith.divf %20, %19 : vector<128x16xf32>
    %c0_16 = arith.constant 0 : index
    %c0_17 = arith.constant 0 : index
    %22 = vector.load %arg7[%c0_16, %c0_17] : memref<128x16xf32, #tpu.memory_space<vmem>>, vector<128x16xf32>
    tpu.vector_store %arg7[%c0_16, %c0_17], %21 {strides = array<i32>} : memref<128x16xf32, #tpu.memory_space<vmem>>, vector<128x16xf32>,
    return
  }
  func.func @transform_0(%arg0: i32) -> (i32, i32) {
    %c0_i32 = arith.constant 0 : i32
    %c0_i32_0 = arith.constant 0 : i32
    return %arg0, %c0_i32 : i32, i32
  }
  func.func @transform_1(%arg0: i32) -> (i32, i32) {
    %c0_i32 = arith.constant 0 : i32
    %c0_i32_0 = arith.constant 0 : i32
    return %arg0, %c0_i32 : i32, i32
  }
  func.func @transform_2(%arg0: i32) -> (i32, i32) {
    %c0_i32 = arith.constant 0 : i32
    %c0_i32_0 = arith.constant 0 : i32
    %c0_i32_1 = arith.constant 0 : i32
    return %c0_i32, %c0_i32_0 : i32, i32
  }
  func.func @transform_3(%arg0: i32) -> (i32, i32) {
    %c0_i32 = arith.constant 0 : i32
    %c0_i32_0 = arith.constant 0 : i32
    %c0_i32_1 = arith.constant 0 : i32
    return %c0_i32, %c0_i32_0 : i32, i32
  }
  func.func @transform_4(%arg0: i32) -> (i32, i32) {
    %c0_i32 = arith.constant 0 : i32
    %c0_i32_0 = arith.constant 0 : i32
    %c0_i32_1 = arith.constant 0 : i32
    return %c0_i32, %c0_i32_0 : i32, i32
  }
  func.func @transform_5(%arg0: i32) -> (i32, i32) {
    %c0_i32 = arith.constant 0 : i32
    %c0_i32_0 = arith.constant 0 : i32
    %c0_i32_1 = arith.constant 0 : i32
    return %c0_i32, %c0_i32_0 : i32, i32
  }
  func.func @transform_6(%arg0: i32) -> (i32, i32) {
    %c0_i32 = arith.constant 0 : i32
    %c0_i32_0 = arith.constant 0 : i32
    return %arg0, %c0_i32 : i32, i32
  }
}

</mosaic_0001>

<llo_original>
// kernel: tpu_custom_call.1
$region0: #{tpu_custom_call.1}
  #allocation0 [shape = 'u32[]', space=smem, size = 0x4, offset = 0x4, fixed_abs, tag = 'smem constant byte address 0x4 - core index']
  #allocation1 [shape = 'u32[144,128]{1,0:T(1,128)}', space=vmem, size = 0x12000, scoped, tag = 'internal scratch']
  %s0 = inlined_call_operand.vmem [shape: f32[256,16], index: 0, kind: input, shape index: {}]
  %s1 = inlined_call_operand.vmem [shape: f32[256,16], index: 1, kind: input, shape index: {}]
  %s2 = inlined_call_operand.vmem [shape: f32[16,128], index: 2, kind: input, shape index: {}]
  %s3 = inlined_call_operand.vmem [shape: f32[1,128], index: 3, kind: input, shape index: {}]
  %s4 = inlined_call_operand.vmem [shape: f32[128,16], index: 4, kind: input, shape index: {}]
  %s5 = inlined_call_operand.vmem [shape: f32[1,16], index: 5, kind: input, shape index: {}]
  %s6 = inlined_call_operand.vmem [shape: f32[256,16], index: 6, kind: output, shape index: {}]
  %s7 = sld [smem:[#allocation0]]
  $region57: #{tpu_custom_call.1} parent=0
    _
  %s9 = ssub.s32 1, %s7
  %s10 = scalar_select 0, %s9, %s7
  loop: start=0, step=1, limit=4
  $region2: #{tpu_custom_call.1} parent=0 // loop_pre_header
    _
  $region3: #{tpu_custom_call.1} parent=0 // loop_header
    %s12 = sphi 0, %s16
    %p13 = scmp.ge.s32.totalorder %s12, 4
    %s22 = sphi 0, %s24
    %s25 = sphi 0, %s22
    %s26 = sphi 0, %s25
    %s42 = sphi 0, %s26
    %s48 = sphi 0, %s50
    %s51 = sphi 0, %s48
    %s52 = sphi 0, %s51
    %s68 = sphi 0, %s52
    %s72 = sphi 0, %s72
    %s74 = sphi 0, %s72
    %s75 = sphi 0, %s74
    %s89 = sphi 0, %s75
    %s93 = sphi 0, %s93
    %s95 = sphi 0, %s93
    %s96 = sphi 0, %s95
    %s110 = sphi 0, %s96
    %s114 = sphi 0, %s114
    %s116 = sphi 0, %s114
    %s117 = sphi 0, %s116
    %s131 = sphi 0, %s117
    %s135 = sphi 0, %s135
    %s137 = sphi 0, %s135
    %s138 = sphi 0, %s137
    %s152 = sphi 0, %s138
    %s158 = sphi 0, %s160
    %s161 = sphi 0, %s158
    %s162 = sphi 0, %s161
    %s178 = sphi 0, %s162
  $region4: #{tpu_custom_call.1} parent=0 // loop_header_branch
    %15 = sbr.rel (%p13) target = $region8
  $region5: #{tpu_custom_call.1} parent=0 // loop_body
    %s17 = ssub.s32 %s12, 1
    %s18 = ssub.s32 %s12, 2
    %s19 = sadd.s32 %s12, 1
    %s20 = ssub.s32 %s12, %s19
    %p21 = scmp.eq.s32.totalorder %s20, 0
    %s23 = sadd.s32 %s22, 1
    %s24 = scalar_select %p21, %s22, %s23
    %p27 = pneg %p21
    %p28 = scmp.eq.s32.totalorder %s12, 1
    %p29 = por %p27, %p28
    %p30 = scmp.ne.s32.totalorder %s22, %s25
    %p31 = scmp.eq.s32.totalorder %s12, 0
    %p32 = por %p30, %p31
    %p33 = scmp.ne.s32.totalorder %s22, %s25
    %p34 = scmp.eq.s32.totalorder %s17, 1
    %p35 = por %p33, %p34
    %p36 = scmp.ne.s32.totalorder %s25, %s26
    %p37 = scmp.eq.s32.totalorder %s17, 0
    %p38 = por %p36, %p37
    %p39 = scmp.ne.s32.totalorder %s25, %s26
    %p40 = scmp.eq.s32.totalorder %s18, 1
    %p41 = por %p39, %p40
    %p43 = scmp.ne.s32.totalorder %s26, %s42
    %p44 = scmp.eq.s32.totalorder %s18, 0
    %p45 = por %p43, %p44
    %s46 = ssub.s32 %s12, %s19
    %p47 = scmp.eq.s32.totalorder %s46, 0
    %s49 = sadd.s32 %s48, 1
    %s50 = scalar_select %p47, %s48, %s49
    %p53 = pneg %p47
    %p54 = scmp.eq.s32.totalorder %s12, 1
    %p55 = por %p53, %p54
    %p56 = scmp.ne.s32.totalorder %s48, %s51
    %p57 = scmp.eq.s32.totalorder %s12, 0
    %p58 = por %p56, %p57
    %p59 = scmp.ne.s32.totalorder %s48, %s51
    %p60 = scmp.eq.s32.totalorder %s17, 1
    %p61 = por %p59, %p60
    %p62 = scmp.ne.s32.totalorder %s51, %s52
    %p63 = scmp.eq.s32.totalorder %s17, 0
    %p64 = por %p62, %p63
    %p65 = scmp.ne.s32.totalorder %s51, %s52
    %p66 = scmp.eq.s32.totalorder %s18, 1
    %p67 = por %p65, %p66
    %p69 = scmp.ne.s32.totalorder %s52, %s68
    %p70 = scmp.eq.s32.totalorder %s18, 0
    %p71 = por %p69, %p70
    %s73 = sadd.s32 %s72, 1
    %p76 = scmp.eq.s32.totalorder %s12, 1
    %p77 = scmp.ne.s32.totalorder %s72, %s74
    %p78 = scmp.eq.s32.totalorder %s12, 0
    %p79 = por %p77, %p78
    %p80 = scmp.ne.s32.totalorder %s72, %s74
    %p81 = scmp.eq.s32.totalorder %s17, 1
    %p82 = por %p80, %p81
    %p83 = scmp.ne.s32.totalorder %s74, %s75
    %p84 = scmp.eq.s32.totalorder %s17, 0
    %p85 = por %p83, %p84
    %p86 = scmp.ne.s32.totalorder %s74, %s75
    %p87 = scmp.eq.s32.totalorder %s18, 1
    %p88 = por %p86, %p87
    %p90 = scmp.ne.s32.totalorder %s75, %s89
    %p91 = scmp.eq.s32.totalorder %s18, 0
    %p92 = por %p90, %p91
    %s94 = sadd.s32 %s93, 1
    %p97 = scmp.eq.s32.totalorder %s12, 1
    %p98 = scmp.ne.s32.totalorder %s93, %s95
    %p99 = scmp.eq.s32.totalorder %s12, 0
    %p100 = por %p98, %p99
    %p101 = scmp.ne.s32.totalorder %s93, %s95
    %p102 = scmp.eq.s32.totalorder %s17, 1
    %p103 = por %p101, %p102
    %p104 = scmp.ne.s32.totalorder %s95, %s96
    %p105 = scmp.eq.s32.totalorder %s17, 0
    %p106 = por %p104, %p105
    %p107 = scmp.ne.s32.totalorder %s95, %s96
    %p108 = scmp.eq.s32.totalorder %s18, 1
    %p109 = por %p107, %p108
    %p111 = scmp.ne.s32.totalorder %s96, %s110
    %p112 = scmp.eq.s32.totalorder %s18, 0
    %p113 = por %p111, %p112
    %s115 = sadd.s32 %s114, 1
    %p118 = scmp.eq.s32.totalorder %s12, 1
    %p119 = scmp.ne.s32.totalorder %s114, %s116
    %p120 = scmp.eq.s32.totalorder %s12, 0
    %p121 = por %p119, %p120
    %p122 = scmp.ne.s32.totalorder %s114, %s116
    %p123 = scmp.eq.s32.totalorder %s17, 1
    %p124 = por %p122, %p123
    %p125 = scmp.ne.s32.totalorder %s116, %s117
    %p126 = scmp.eq.s32.totalorder %s17, 0
    %p127 = por %p125, %p126
    %p128 = scmp.ne.s32.totalorder %s116, %s117
    %p129 = scmp.eq.s32.totalorder %s18, 1
    %p130 = por %p128, %p129
    %p132 = scmp.ne.s32.totalorder %s117, %s131
    %p133 = scmp.eq.s32.totalorder %s18, 0
    %p134 = por %p132, %p133
    %s136 = sadd.s32 %s135, 1
    %p139 = scmp.eq.s32.totalorder %s12, 1
    %p140 = scmp.ne.s32.totalorder %s135, %s137
    %p141 = scmp.eq.s32.totalorder %s12, 0
    %p142 = por %p140, %p141
    %p143 = scmp.ne.s32.totalorder %s135, %s137
    %p144 = scmp.eq.s32.totalorder %s17, 1
    %p145 = por %p143, %p144
    %p146 = scmp.ne.s32.totalorder %s137, %s138
    %p147 = scmp.eq.s32.totalorder %s17, 0
    %p148 = por %p146, %p147
    %p149 = scmp.ne.s32.totalorder %s137, %s138
    %p150 = scmp.eq.s32.totalorder %s18, 1
    %p151 = por %p149, %p150
    %p153 = scmp.ne.s32.totalorder %s138, %s152
    %p154 = scmp.eq.s32.totalorder %s18, 0
    %p155 = por %p153, %p154
    %s156 = ssub.s32 %s12, %s19
    %p157 = scmp.eq.s32.totalorder %s156, 0
    %s159 = sadd.s32 %s158, 1
    %s160 = scalar_select %p157, %s158, %s159
    %p163 = pneg %p157
    %p164 = scmp.eq.s32.totalorder %s12, 1
    %p165 = por %p163, %p164
    %p166 = scmp.ne.s32.totalorder %s158, %s161
    %p167 = scmp.eq.s32.totalorder %s12, 0
    %p168 = por %p166, %p167
    %p169 = scmp.ne.s32.totalorder %s158, %s161
    %p170 = scmp.eq.s32.totalorder %s17, 1
    %p171 = por %p169, %p170
    %p172 = scmp.ne.s32.totalorder %s161, %s162
    %p173 = scmp.eq.s32.totalorder %s17, 0
    %p174 = por %p172, %p173
    %p175 = scmp.ne.s32.totalorder %s161, %s162
    %p176 = scmp.eq.s32.totalorder %s18, 1
    %p177 = por %p175, %p176
    %p179 = scmp.ne.s32.totalorder %s162, %s178
    %p180 = scmp.eq.s32.totalorder %s18, 0
    %p181 = por %p179, %p180
    %p182 = scmp.le.s32.totalorder 1, %s12
    %p183 = scmp.lt.s32.totalorder %s12, 3
    %p184 = pnand %p182, %p183
    %p185 = pneg %p184
    // Predicated region
    $region9: #{tpu_custom_call.1} parent=5 // pred_check
      _
    $region10: #{tpu_custom_call.1} parent=5 // pred_check_branch
      %187 = sbr.rel (%p184) target = $region12
    $region11: #{tpu_custom_call.1} parent=5 // pred_region
      %s188 = ssub.s32 %s12, 1
      // Predicated region
      $region13: #{tpu_custom_call.1} parent=11 // pred_check
        %p189 = pneg %p85
      $region14: #{tpu_custom_call.1} parent=11 // pred_check_branch
        %191 = sbr.rel (%p189) target = $region16
      $region15: #{tpu_custom_call.1} parent=11 // pred_region
        _
      $region16: #{tpu_custom_call.1} parent=11 // pred_fallthru
        _
      // Predicated region
      $region17: #{tpu_custom_call.1} parent=11 // pred_check
        %p192 = pneg %p106
      $region18: #{tpu_custom_call.1} parent=11 // pred_check_branch
        %194 = sbr.rel (%p192) target = $region20
      $region19: #{tpu_custom_call.1} parent=11 // pred_region
        _
      $region20: #{tpu_custom_call.1} parent=11 // pred_fallthru
        _
      // Predicated region
      $region21: #{tpu_custom_call.1} parent=11 // pred_check
        %p195 = pneg %p127
      $region22: #{tpu_custom_call.1} parent=11 // pred_check_branch
        %197 = sbr.rel (%p195) target = $region24
      $region23: #{tpu_custom_call.1} parent=11 // pred_region
        _
      $region24: #{tpu_custom_call.1} parent=11 // pred_fallthru
        _
      // Predicated region
      $region25: #{tpu_custom_call.1} parent=11 // pred_check
        %p198 = pneg %p148
      $region26: #{tpu_custom_call.1} parent=11 // pred_check_branch
        %200 = sbr.rel (%p198) target = $region28
      $region27: #{tpu_custom_call.1} parent=11 // pred_region
        _
      $region28: #{tpu_custom_call.1} parent=11 // pred_fallthru
        _
    $region12: #{tpu_custom_call.1} parent=5 // pred_fallthru
      _
    %p201 = scmp.lt.s32.totalorder %s12, 2
    // Predicated region
    $region29: #{tpu_custom_call.1} parent=5 // pred_check
      %p202 = pneg %p201
    $region30: #{tpu_custom_call.1} parent=5 // pred_check_branch
      %204 = sbr.rel (%p202) target = $region32
    $region31: #{tpu_custom_call.1} parent=5 // pred_region
      // Predicated region
      $region33: #{tpu_custom_call.1} parent=31 // pred_check
        %p205 = pneg %p32
      $region34: #{tpu_custom_call.1} parent=31 // pred_check_branch
        %207 = sbr.rel (%p205) target = $region36
      $region35: #{tpu_custom_call.1} parent=31 // pred_region
        %s208 = smul.u32 16, %s12
        %p209 = scmp.lt.s32.totalorder %s208, 31
        %s210 = scalar_select %p209, %s208, 31
        %s211 = smul.addr %s210, 8
        %s212 = scalar_lea.vmem %s0, %s211
        %s213 = smul.u32 16, %s12
      $region36: #{tpu_custom_call.1} parent=31 // pred_fallthru
        _
      // Predicated region
      $region37: #{tpu_custom_call.1} parent=31 // pred_check
        %p214 = pneg %p58
      $region38: #{tpu_custom_call.1} parent=31 // pred_check_branch
        %216 = sbr.rel (%p214) target = $region40
      $region39: #{tpu_custom_call.1} parent=31 // pred_region
        %s217 = smul.u32 16, %s12
        %p218 = scmp.lt.s32.totalorder %s217, 31
        %s219 = scalar_select %p218, %s217, 31
        %s220 = smul.addr %s219, 8
        %s221 = scalar_lea.vmem %s1, %s220
        %s222 = smul.u32 16, %s12
      $region40: #{tpu_custom_call.1} parent=31 // pred_fallthru
        _
    $region32: #{tpu_custom_call.1} parent=5 // pred_fallthru
      _
    %p223 = scmp.le.s32.totalorder 1, %s12
    %p224 = scmp.lt.s32.totalorder %s12, 3
    %p225 = pnand %p223, %p224
    %p226 = pneg %p225
    // Predicated region
    $region41: #{tpu_custom_call.1} parent=5 // pred_check
      _
    $region42: #{tpu_custom_call.1} parent=5 // pred_check_branch
      %228 = sbr.rel (%p225) target = $region44
    $region43: #{tpu_custom_call.1} parent=5 // pred_region
      %s229 = ssub.s32 %s12, 1
      %s230 = smul.u32 16, %s17
      %p231 = scmp.lt.s32.totalorder %s230, 31
      %s232 = scalar_select %p231, %s230, 31
      %s233 = smul.addr %s232, 8
      %s234 = scalar_lea.vmem %s0, %s233
      %p235 = pneg %p38
      %p236 = pneg %p35
      %s237 = smul.u32 16, %s17
      %p238 = scmp.lt.s32.totalorder %s237, 31
      %s239 = scalar_select %p238, %s237, 31
      %s240 = smul.addr %s239, 8
      %s241 = scalar_lea.vmem %s1, %s240
      %p242 = pneg %p64
      %p243 = pneg %p61
      %p244 = pneg %p85
      %p245 = pneg %p82
      %p246 = pneg %p106
      %p247 = pneg %p103
      %p248 = pneg %p127
      %p249 = pneg %p124
      %p250 = pneg %p148
      %p251 = pneg %p145
      %p252 = pneg %p174
      %p253 = pneg %p171
      %s254 = smul.u32 16, %s17
      %p255 = scmp.lt.s32.totalorder %s254, 31
      %s256 = scalar_select %p255, %s254, 31
      %s257 = smul.addr %s256, 8
      %s258 = scalar_lea.vmem %s6, %s257
      %s259 = smul.u32 16, %s17
      %p260 = scmp.lt.s32.totalorder %s259, 31
      %s261 = scalar_select %p260, %s259, 31
      %s262 = smul.addr %s261, 8
      %s263 = scalar_lea.vmem %s0, %s262
      %s264 = smul.u32 16, %s17
      %s265 = smul.u32 16, %s17
      %p266 = scmp.lt.s32.totalorder %s265, 31
      %s267 = scalar_select %p266, %s265, 31
      %s268 = smul.addr %s267, 8
      %s269 = scalar_lea.vmem %s1, %s268
      %s270 = smul.u32 16, %s17
      %s271 = smul.u32 16, %s17
      %p272 = scmp.lt.s32.totalorder %s271, 31
      %s273 = scalar_select %p272, %s271, 31
      %s274 = smul.addr %s273, 8
      %s275 = scalar_lea.vmem %s6, %s274
      %s276 = smul.u32 16, %s17
      %v277 = vld [vmem:[%s263] sm:$0xff]
      %v278 = vld [vmem:[%s263 + $0x8] sm:$0xff]
      %v279 = vld [vmem:[%s263 + $0x10] sm:$0xff]
      %v280 = vld [vmem:[%s263 + $0x18] sm:$0xff]
      %v281 = vld [vmem:[%s263 + $0x20] sm:$0xff]
      %v282 = vld [vmem:[%s263 + $0x28] sm:$0xff]
      %v283 = vld [vmem:[%s263 + $0x30] sm:$0xff]
      %v284 = vld [vmem:[%s263 + $0x38] sm:$0xff]
      %v285 = vld [vmem:[%s263 + $0x40] sm:$0xff]
      %v286 = vld [vmem:[%s263 + $0x48] sm:$0xff]
      %v287 = vld [vmem:[%s263 + $0x50] sm:$0xff]
      %v288 = vld [vmem:[%s263 + $0x58] sm:$0xff]
      %v289 = vld [vmem:[%s263 + $0x60] sm:$0xff]
      %v290 = vld [vmem:[%s263 + $0x68] sm:$0xff]
      %v291 = vld [vmem:[%s263 + $0x70] sm:$0xff]
      %v292 = vld [vmem:[%s263 + $0x78] sm:$0xff]
      %v293 = vld [vmem:[%s2] sm:$0xff]
      %v294 = vld [vmem:[%s2 + $0x8] sm:$0xff]
      %v295 = vld [vmem:[%s3] sm:$0x1]
      %v297 = vlaneseq
      %v298 = vshrl.u32 %v297, 7
      %v299 = vsub.s32 0, %v298
      %v300 = vrot.slane %v295, %v299
      %vm302 = vcmask 130048
      %v304 = vsel %vm302, %v277, 0
      %v307 = vsel %vm302, %v278, 0
      %v310 = vsel %vm302, %v279, 0
      %v313 = vsel %vm302, %v280, 0
      %v316 = vsel %vm302, %v281, 0
      %v319 = vsel %vm302, %v282, 0
      %v322 = vsel %vm302, %v283, 0
      %v325 = vsel %vm302, %v284, 0
      %v328 = vsel %vm302, %v285, 0
      %v331 = vsel %vm302, %v286, 0
      %v334 = vsel %vm302, %v287, 0
      %v337 = vsel %vm302, %v288, 0
      %v340 = vsel %vm302, %v289, 0
      %v343 = vsel %vm302, %v290, 0
      %v346 = vsel %vm302, %v291, 0
      %v349 = vsel %vm302, %v292, 0
      %351 = vmatprep.subr.mxu0 0.0
      %352 = vmatpush1.msra.mxu0 %v293
      %353 = vmatprep.subr.mxu0 0.0
      %354 = vmatpush1.msra.mxu0 %v294
      %355 = vmatprep.subr.mxu0 0.0
      %356 = vmatpush1.msra.mxu0 0.0
      %357 = vmatprep.subr.mxu0 0.0
      %358 = vmatpush1.msra.mxu0 0.0
      %359 = vmatprep.subr.mxu0 0.0
      %360 = vmatpush1.msra.mxu0 0.0
      %361 = vmatprep.subr.mxu0 0.0
      %362 = vmatpush1.msra.mxu0 0.0
      %363 = vmatprep.subr.mxu0 0.0
      %364 = vmatpush1.msra.mxu0 0.0
      %365 = vmatprep.subr.mxu0 0.0
      %366 = vmatpush1.msra.mxu0 0.0
      %367 = vmatprep.subr.mxu0 0.0
      %368 = vmatpush1.msra.mxu0 0.0
      %369 = vmatprep.subr.mxu0 0.0
      %370 = vmatpush1.msra.mxu0 0.0
      %371 = vmatprep.subr.mxu0 0.0
      %372 = vmatpush1.msra.mxu0 0.0
      %373 = vmatprep.subr.mxu0 0.0
      %374 = vmatpush1.msra.mxu0 0.0
      %375 = vmatprep.subr.mxu0 0.0
      %376 = vmatpush1.msra.mxu0 0.0
      %377 = vmatprep.subr.mxu0 0.0
      %378 = vmatpush1.msra.mxu0 0.0
      %379 = vmatprep.subr.mxu0 0.0
      %380 = vmatpush1.msra.mxu0 0.0
      %381 = vmatprep.subr.mxu0 0.0
      %382 = vmatpush1.msra.mxu0 0.0
      %383 = vmatprep.subr.mxu0 0.0
      %384 = vmatpush1.msra.mxu0 0.0
      %385 = vmatprep.subr.mxu0 0.0
      %386 = vmatpush1.msra.mxu0 0.0
      %387 = vmatprep.subr.mxu0 0.0
      %388 = vmatpush1.msra.mxu0 0.0
      %389 = vmatprep.subr.mxu0 0.0
      %390 = vmatpush1.msra.mxu0 0.0
      %391 = vmatprep.subr.mxu0 0.0
      %392 = vmatpush1.msra.mxu0 0.0
      %393 = vmatprep.subr.mxu0 0.0
      %394 = vmatpush1.msra.mxu0 0.0
      %395 = vmatprep.subr.mxu0 0.0
      %396 = vmatpush1.msra.mxu0 0.0
      %397 = vmatprep.subr.mxu0 0.0
      %398 = vmatpush1.msra.mxu0 0.0
      %399 = vmatprep.subr.mxu0 0.0
      %400 = vmatpush1.msra.mxu0 0.0
      %401 = vmatprep.subr.mxu0 0.0
      %402 = vmatpush1.msra.mxu0 0.0
      %403 = vmatprep.subr.mxu0 0.0
      %404 = vmatpush1.msra.mxu0 0.0
      %405 = vmatprep.subr.mxu0 0.0
      %406 = vmatpush1.msra.mxu0 0.0
      %407 = vmatprep.subr.mxu0 0.0
      %408 = vmatpush1.msra.mxu0 0.0
      %409 = vmatprep.subr.mxu0 0.0
      %410 = vmatpush1.msra.mxu0 0.0
      %411 = vmatprep.subr.mxu0 0.0
      %412 = vmatpush1.msra.mxu0 0.0
      %413 = vmatprep.subr.mxu0 0.0
      %414 = vmatpush1.msra.mxu0 0.0
      %415 = vmatprep.mubr.f32.mxu0 0.0
      %416 = vmatmul.mubr.f32.gmra.mrb[0].mxu0 %v304
      %v417 = vpop.f32.mrb[0].mxu0
      %v418 = vadd.f32 %v300, %v417
      %v419 = vpop.f32.mrb[0].mxu0
      %420 = vmatprep.mubr.f32.mxu0 0.0
      %421 = vmatmul.mubr.f32.gmra.mrb[0].mxu0 %v307
      %v422 = vpop.f32.mrb[0].mxu0
      %v423 = vadd.f32 %v300, %v422
      %v424 = vpop.f32.mrb[0].mxu0
      %425 = vmatprep.mubr.f32.mxu0 0.0
      %426 = vmatmul.mubr.f32.gmra.mrb[0].mxu0 %v310
      %v427 = vpop.f32.mrb[0].mxu0
      %v428 = vadd.f32 %v300, %v427
      %v429 = vpop.f32.mrb[0].mxu0
      %430 = vmatprep.mubr.f32.mxu0 0.0
      %431 = vmatmul.mubr.f32.gmra.mrb[0].mxu0 %v313
      %v432 = vpop.f32.mrb[0].mxu0
      %v433 = vadd.f32 %v300, %v432
      %v434 = vpop.f32.mrb[0].mxu0
      %435 = vmatprep.mubr.f32.mxu0 0.0
      %436 = vmatmul.mubr.f32.gmra.mrb[0].mxu0 %v316
      %v437 = vpop.f32.mrb[0].mxu0
      %v438 = vadd.f32 %v300, %v437
      %v439 = vpop.f32.mrb[0].mxu0
      %440 = vmatprep.mubr.f32.mxu0 0.0
      %441 = vmatmul.mubr.f32.gmra.mrb[0].mxu0 %v319
      %v442 = vpop.f32.mrb[0].mxu0
      %v443 = vadd.f32 %v300, %v442
      %v444 = vpop.f32.mrb[0].mxu0
      %445 = vmatprep.mubr.f32.mxu0 0.0
      %446 = vmatmul.mubr.f32.gmra.mrb[0].mxu0 %v322
      %v447 = vpop.f32.mrb[0].mxu0
      %v448 = vadd.f32 %v300, %v447
      %v449 = vpop.f32.mrb[0].mxu0
      %450 = vmatprep.mubr.f32.mxu0 0.0
      %451 = vmatmul.mubr.f32.gmra.mrb[0].mxu0 %v325
      %v452 = vpop.f32.mrb[0].mxu0
      %v453 = vadd.f32 %v300, %v452
      %v454 = vpop.f32.mrb[0].mxu0
      %455 = vmatprep.mubr.f32.mxu0 0.0
      %456 = vmatmul.mubr.f32.gmra.mrb[0].mxu0 %v328
      %v457 = vpop.f32.mrb[0].mxu0
      %v458 = vadd.f32 %v300, %v457
      %v459 = vpop.f32.mrb[0].mxu0
      %460 = vmatprep.mubr.f32.mxu0 0.0
      %461 = vmatmul.mubr.f32.gmra.mrb[0].mxu0 %v331
      %v462 = vpop.f32.mrb[0].mxu0
      %v463 = vadd.f32 %v300, %v462
      %v464 = vpop.f32.mrb[0].mxu0
      %465 = vmatprep.mubr.f32.mxu0 0.0
      %466 = vmatmul.mubr.f32.gmra.mrb[0].mxu0 %v334
      %v467 = vpop.f32.mrb[0].mxu0
      %v468 = vadd.f32 %v300, %v467
      %v469 = vpop.f32.mrb[0].mxu0
      %470 = vmatprep.mubr.f32.mxu0 0.0
      %471 = vmatmul.mubr.f32.gmra.mrb[0].mxu0 %v337
      %v472 = vpop.f32.mrb[0].mxu0
      %v473 = vadd.f32 %v300, %v472
      %v474 = vpop.f32.mrb[0].mxu0
      %475 = vmatprep.mubr.f32.mxu0 0.0
      %476 = vmatmul.mubr.f32.gmra.mrb[0].mxu0 %v340
      %v477 = vpop.f32.mrb[0].mxu0
      %v478 = vadd.f32 %v300, %v477
      %v479 = vpop.f32.mrb[0].mxu0
      %480 = vmatprep.mubr.f32.mxu0 0.0
      %481 = vmatmul.mubr.f32.gmra.mrb[0].mxu0 %v343
      %v482 = vpop.f32.mrb[0].mxu0
      %v483 = vadd.f32 %v300, %v482
      %v484 = vpop.f32.mrb[0].mxu0
      %485 = vmatprep.mubr.f32.mxu0 0.0
      %486 = vmatmul.mubr.f32.gmra.mrb[0].mxu0 %v346
      %v487 = vpop.f32.mrb[0].mxu0
      %v488 = vadd.f32 %v300, %v487
      %v489 = vpop.f32.mrb[0].mxu0
      %490 = vmatprep.mubr.f32.mxu0 0.0
      %491 = vmatmul.mubr.f32.gmra.mrb[0].mxu0 %v349
      %v492 = vpop.f32.mrb[0].mxu0
      %v493 = vadd.f32 %v300, %v492
      %v494 = vpop.f32.mrb[0].mxu0
      %495 = vdwg.mxu0
      %v496 = vmax.f32 %v418, 0.0
      %v497 = vmax.f32 %v423, 0.0
      %v498 = vmax.f32 %v428, 0.0
      %v499 = vmax.f32 %v433, 0.0
      %v500 = vmax.f32 %v438, 0.0
      %v501 = vmax.f32 %v443, 0.0
      %v502 = vmax.f32 %v448, 0.0
      %v503 = vmax.f32 %v453, 0.0
      %v504 = vmax.f32 %v458, 0.0
      %v505 = vmax.f32 %v463, 0.0
      %v506 = vmax.f32 %v468, 0.0
      %v507 = vmax.f32 %v473, 0.0
      %v508 = vmax.f32 %v478, 0.0
      %v509 = vmax.f32 %v483, 0.0
      %v510 = vmax.f32 %v488, 0.0
      %v511 = vmax.f32 %v493, 0.0
      %v512 = vld [vmem:[%s4] sm:$0xff]
      %v513 = vld [vmem:[%s4 + $0x8] sm:$0xff]
      %v514 = vld [vmem:[%s4 + $0x10] sm:$0xff]
      %v515 = vld [vmem:[%s4 + $0x18] sm:$0xff]
      %v516 = vld [vmem:[%s4 + $0x20] sm:$0xff]
      %v517 = vld [vmem:[%s4 + $0x28] sm:$0xff]
      %v518 = vld [vmem:[%s4 + $0x30] sm:$0xff]
      %v519 = vld [vmem:[%s4 + $0x38] sm:$0xff]
      %v520 = vld [vmem:[%s4 + $0x40] sm:$0xff]
      %v521 = vld [vmem:[%s4 + $0x48] sm:$0xff]
      %v522 = vld [vmem:[%s4 + $0x50] sm:$0xff]
      %v523 = vld [vmem:[%s4 + $0x58] sm:$0xff]
      %v524 = vld [vmem:[%s4 + $0x60] sm:$0xff]
      %v525 = vld [vmem:[%s4 + $0x68] sm:$0xff]
      %v526 = vld [vmem:[%s4 + $0x70] sm:$0xff]
      %v527 = vld [vmem:[%s4 + $0x78] sm:$0xff]
      %v528 = vld [vmem:[%s5] sm:$0x1]
      %v530 = vlaneseq
      %v531 = vshrl.u32 %v530, 7
      %v532 = vsub.s32 0, %v531
      %v533 = vrot.slane %v528, %v532
      %535 = vmatprep.subr.mxu0 0.0
      %536 = vmatpush1.msra.mxu0 %v512
      %537 = vmatprep.subr.mxu0 0.0
      %538 = vmatpush1.msra.mxu0 %v513
      %539 = vmatprep.subr.mxu0 0.0
      %540 = vmatpush1.msra.mxu0 %v514
      %541 = vmatprep.subr.mxu0 0.0
      %542 = vmatpush1.msra.mxu0 %v515
      %543 = vmatprep.subr.mxu0 0.0
      %544 = vmatpush1.msra.mxu0 %v516
      %545 = vmatprep.subr.mxu0 0.0
      %546 = vmatpush1.msra.mxu0 %v517
      %547 = vmatprep.subr.mxu0 0.0
      %548 = vmatpush1.msra.mxu0 %v518
      %549 = vmatprep.subr.mxu0 0.0
      %550 = vmatpush1.msra.mxu0 %v519
      %551 = vmatprep.subr.mxu0 0.0
      %552 = vmatpush1.msra.mxu0 %v520
      %553 = vmatprep.subr.mxu0 0.0
      %554 = vmatpush1.msra.mxu0 %v521
      %555 = vmatprep.subr.mxu0 0.0
      %556 = vmatpush1.msra.mxu0 %v522
      %557 = vmatprep.subr.mxu0 0.0
      %558 = vmatpush1.msra.mxu0 %v523
      %559 = vmatprep.subr.mxu0 0.0
      %560 = vmatpush1.msra.mxu0 %v524
      %561 = vmatprep.subr.mxu0 0.0
      %562 = vmatpush1.msra.mxu0 %v525
      %563 = vmatprep.subr.mxu0 0.0
      %564 = vmatpush1.msra.mxu0 %v526
      %565 = vmatprep.subr.mxu0 0.0
      %566 = vmatpush1.msra.mxu0 %v527
      %567 = vmatprep.subr.mxu0 0.0
      %568 = vmatpush1.msra.mxu0 0.0
      %569 = vmatprep.subr.mxu0 0.0
      %570 = vmatpush1.msra.mxu0 0.0
      %571 = vmatprep.subr.mxu0 0.0
      %572 = vmatpush1.msra.mxu0 0.0
      %573 = vmatprep.subr.mxu0 0.0
      %574 = vmatpush1.msra.mxu0 0.0
      %575 = vmatprep.subr.mxu0 0.0
      %576 = vmatpush1.msra.mxu0 0.0
      %577 = vmatprep.subr.mxu0 0.0
      %578 = vmatpush1.msra.mxu0 0.0
      %579 = vmatprep.subr.mxu0 0.0
      %580 = vmatpush1.msra.mxu0 0.0
      %581 = vmatprep.subr.mxu0 0.0
      %582 = vmatpush1.msra.mxu0 0.0
      %583 = vmatprep.subr.mxu0 0.0
      %584 = vmatpush1.msra.mxu0 0.0
      %585 = vmatprep.subr.mxu0 0.0
      %586 = vmatpush1.msra.mxu0 0.0
      %587 = vmatprep.subr.mxu0 0.0
      %588 = vmatpush1.msra.mxu0 0.0
      %589 = vmatprep.subr.mxu0 0.0
      %590 = vmatpush1.msra.mxu0 0.0
      %591 = vmatprep.subr.mxu0 0.0
      %592 = vmatpush1.msra.mxu0 0.0
      %593 = vmatprep.subr.mxu0 0.0
      %594 = vmatpush1.msra.mxu0 0.0
      %595 = vmatprep.subr.mxu0 0.0
      %596 = vmatpush1.msra.mxu0 0.0
      %597 = vmatprep.subr.mxu0 0.0
      %598 = vmatpush1.msra.mxu0 0.0
      %599 = vmatprep.mubr.f32.mxu0 0.0
      %600 = vmatmul.mubr.f32.gmra.mrb[0].mxu0 %v496
      %v601 = vpop.f32.mrb[0].mxu0
      %v602 = vadd.f32 %v533, %v601
      %v603 = vpop.f32.mrb[0].mxu0
      %604 = vmatprep.mubr.f32.mxu0 0.0
      %605 = vmatmul.mubr.f32.gmra.mrb[0].mxu0 %v497
      %v606 = vpop.f32.mrb[0].mxu0
      %v607 = vadd.f32 %v533, %v606
      %v608 = vpop.f32.mrb[0].mxu0
      %609 = vmatprep.mubr.f32.mxu0 0.0
      %610 = vmatmul.mubr.f32.gmra.mrb[0].mxu0 %v498
      %v611 = vpop.f32.mrb[0].mxu0
      %v612 = vadd.f32 %v533, %v611
      %v613 = vpop.f32.mrb[0].mxu0
      %614 = vmatprep.mubr.f32.mxu0 0.0
      %615 = vmatmul.mubr.f32.gmra.mrb[0].mxu0 %v499
      %v616 = vpop.f32.mrb[0].mxu0
      %v617 = vadd.f32 %v533, %v616
      %v618 = vpop.f32.mrb[0].mxu0
      %619 = vmatprep.mubr.f32.mxu0 0.0
      %620 = vmatmul.mubr.f32.gmra.mrb[0].mxu0 %v500
      %v621 = vpop.f32.mrb[0].mxu0
      %v622 = vadd.f32 %v533, %v621
      %v623 = vpop.f32.mrb[0].mxu0
      %624 = vmatprep.mubr.f32.mxu0 0.0
      %625 = vmatmul.mubr.f32.gmra.mrb[0].mxu0 %v501
      %v626 = vpop.f32.mrb[0].mxu0
      %v627 = vadd.f32 %v533, %v626
      %v628 = vpop.f32.mrb[0].mxu0
      %629 = vmatprep.mubr.f32.mxu0 0.0
      %630 = vmatmul.mubr.f32.gmra.mrb[0].mxu0 %v502
      %v631 = vpop.f32.mrb[0].mxu0
      %v632 = vadd.f32 %v533, %v631
      %v633 = vpop.f32.mrb[0].mxu0
      %634 = vmatprep.mubr.f32.mxu0 0.0
      %635 = vmatmul.mubr.f32.gmra.mrb[0].mxu0 %v503
      %v636 = vpop.f32.mrb[0].mxu0
      %v637 = vadd.f32 %v533, %v636
      %v638 = vpop.f32.mrb[0].mxu0
      %639 = vmatprep.mubr.f32.mxu0 0.0
      %640 = vmatmul.mubr.f32.gmra.mrb[0].mxu0 %v504
      %v641 = vpop.f32.mrb[0].mxu0
      %v642 = vadd.f32 %v533, %v641
      %v643 = vpop.f32.mrb[0].mxu0
      %644 = vmatprep.mubr.f32.mxu0 0.0
      %645 = vmatmul.mubr.f32.gmra.mrb[0].mxu0 %v505
      %v646 = vpop.f32.mrb[0].mxu0
      %v647 = vadd.f32 %v533, %v646
      %v648 = vpop.f32.mrb[0].mxu0
      %649 = vmatprep.mubr.f32.mxu0 0.0
      %650 = vmatmul.mubr.f32.gmra.mrb[0].mxu0 %v506
      %v651 = vpop.f32.mrb[0].mxu0
      %v652 = vadd.f32 %v533, %v651
      %v653 = vpop.f32.mrb[0].mxu0
      %654 = vmatprep.mubr.f32.mxu0 0.0
      %655 = vmatmul.mubr.f32.gmra.mrb[0].mxu0 %v507
      %v656 = vpop.f32.mrb[0].mxu0
      %v657 = vadd.f32 %v533, %v656
      %v658 = vpop.f32.mrb[0].mxu0
      %659 = vmatprep.mubr.f32.mxu0 0.0
      %660 = vmatmul.mubr.f32.gmra.mrb[0].mxu0 %v508
      %v661 = vpop.f32.mrb[0].mxu0
      %v662 = vadd.f32 %v533, %v661
      %v663 = vpop.f32.mrb[0].mxu0
      %664 = vmatprep.mubr.f32.mxu0 0.0
      %665 = vmatmul.mubr.f32.gmra.mrb[0].mxu0 %v509
      %v666 = vpop.f32.mrb[0].mxu0
      %v667 = vadd.f32 %v533, %v666
      %v668 = vpop.f32.mrb[0].mxu0
      %669 = vmatprep.mubr.f32.mxu0 0.0
      %670 = vmatmul.mubr.f32.gmra.mrb[0].mxu0 %v510
      %v671 = vpop.f32.mrb[0].mxu0
      %v672 = vadd.f32 %v533, %v671
      %v673 = vpop.f32.mrb[0].mxu0
      %674 = vmatprep.mubr.f32.mxu0 0.0
      %675 = vmatmul.mubr.f32.gmra.mrb[0].mxu0 %v511
      %v676 = vpop.f32.mrb[0].mxu0
      %v677 = vadd.f32 %v533, %v676
      %v678 = vpop.f32.mrb[0].mxu0
      %679 = vdwg.mxu0
      %v680 = vld [vmem:[%s269] sm:$0xff]
      %v681 = vld [vmem:[%s269 + $0x8] sm:$0xff]
      %v682 = vld [vmem:[%s269 + $0x10] sm:$0xff]
      %v683 = vld [vmem:[%s269 + $0x18] sm:$0xff]
      %v684 = vld [vmem:[%s269 + $0x20] sm:$0xff]
      %v685 = vld [vmem:[%s269 + $0x28] sm:$0xff]
      %v686 = vld [vmem:[%s269 + $0x30] sm:$0xff]
      %v687 = vld [vmem:[%s269 + $0x38] sm:$0xff]
      %v688 = vld [vmem:[%s269 + $0x40] sm:$0xff]
      %v689 = vld [vmem:[%s269 + $0x48] sm:$0xff]
      %v690 = vld [vmem:[%s269 + $0x50] sm:$0xff]
      %v691 = vld [vmem:[%s269 + $0x58] sm:$0xff]
      %v692 = vld [vmem:[%s269 + $0x60] sm:$0xff]
      %v693 = vld [vmem:[%s269 + $0x68] sm:$0xff]
      %v694 = vld [vmem:[%s269 + $0x70] sm:$0xff]
      %v695 = vld [vmem:[%s269 + $0x78] sm:$0xff]
      %v696 = vadd.f32 %v602, %v680
      %v697 = vadd.f32 %v607, %v681
      %v698 = vadd.f32 %v612, %v682
      %v699 = vadd.f32 %v617, %v683
      %v700 = vadd.f32 %v622, %v684
      %v701 = vadd.f32 %v627, %v685
      %v702 = vadd.f32 %v632, %v686
      %v703 = vadd.f32 %v637, %v687
      %v704 = vadd.f32 %v642, %v688
      %v705 = vadd.f32 %v647, %v689
      %v706 = vadd.f32 %v652, %v690
      %v707 = vadd.f32 %v657, %v691
      %v708 = vadd.f32 %v662, %v692
      %v709 = vadd.f32 %v667, %v693
      %v710 = vadd.f32 %v672, %v694
      %v711 = vadd.f32 %v677, %v695
      %v712 = vsub.f32 0.0, %v696
      %v713 = vsub.f32 0.0, %v697
      %v714 = vsub.f32 0.0, %v698
      %v715 = vsub.f32 0.0, %v699
      %v716 = vsub.f32 0.0, %v700
      %v717 = vsub.f32 0.0, %v701
      %v718 = vsub.f32 0.0, %v702
      %v719 = vsub.f32 0.0, %v703
      %v720 = vsub.f32 0.0, %v704
      %v721 = vsub.f32 0.0, %v705
      %v722 = vsub.f32 0.0, %v706
      %v723 = vsub.f32 0.0, %v707
      %v724 = vsub.f32 0.0, %v708
      %v725 = vsub.f32 0.0, %v709
      %v726 = vsub.f32 0.0, %v710
      %v727 = vsub.f32 0.0, %v711
      %v728 = vmul.f32 %v712, 1.442695
      %v729 = vpow.pop %v728
      %v730 = vmul.f32 %v713, 1.442695
      %v731 = vpow.pop %v730
      %v732 = vmul.f32 %v714, 1.442695
      %v733 = vpow.pop %v732
      %v734 = vmul.f32 %v715, 1.442695
      %v735 = vpow.pop %v734
      %v736 = vmul.f32 %v716, 1.442695
      %v737 = vpow.pop %v736
      %v738 = vmul.f32 %v717, 1.442695
      %v739 = vpow.pop %v738
      %v740 = vmul.f32 %v718, 1.442695
      %v741 = vpow.pop %v740
      %v742 = vmul.f32 %v719, 1.442695
      %v743 = vpow.pop %v742
      %v744 = vmul.f32 %v720, 1.442695
      %v745 = vpow.pop %v744
      %v746 = vmul.f32 %v721, 1.442695
      %v747 = vpow.pop %v746
      %v748 = vmul.f32 %v722, 1.442695
      %v749 = vpow.pop %v748
      %v750 = vmul.f32 %v723, 1.442695
      %v751 = vpow.pop %v750
      %v752 = vmul.f32 %v724, 1.442695
      %v753 = vpow.pop %v752
      %v754 = vmul.f32 %v725, 1.442695
      %v755 = vpow.pop %v754
      %v756 = vmul.f32 %v726, 1.442695
      %v757 = vpow.pop %v756
      %v758 = vmul.f32 %v727, 1.442695
      %v759 = vpow.pop %v758
      %v760 = vadd.f32 %v729, 1.0
      %v761 = vadd.f32 %v731, 1.0
      %v762 = vadd.f32 %v733, 1.0
      %v763 = vadd.f32 %v735, 1.0
      %v764 = vadd.f32 %v737, 1.0
      %v765 = vadd.f32 %v739, 1.0
      %v766 = vadd.f32 %v741, 1.0
      %v767 = vadd.f32 %v743, 1.0
      %v768 = vadd.f32 %v745, 1.0
      %v769 = vadd.f32 %v747, 1.0
      %v770 = vadd.f32 %v749, 1.0
      %v771 = vadd.f32 %v751, 1.0
      %v772 = vadd.f32 %v753, 1.0
      %v773 = vadd.f32 %v755, 1.0
      %v774 = vadd.f32 %v757, 1.0
      %v775 = vadd.f32 %v759, 1.0
      %v776 = vrcp.pop %v760
      %v777 = vmul.f32 1.0, %v776
      %v778 = vrcp.pop %v761
      %v779 = vmul.f32 1.0, %v778
      %v780 = vrcp.pop %v762
      %v781 = vmul.f32 1.0, %v780
      %v782 = vrcp.pop %v763
      %v783 = vmul.f32 1.0, %v782
      %v784 = vrcp.pop %v764
      %v785 = vmul.f32 1.0, %v784
      %v786 = vrcp.pop %v765
      %v787 = vmul.f32 1.0, %v786
      %v788 = vrcp.pop %v766
      %v789 = vmul.f32 1.0, %v788
      %v790 = vrcp.pop %v767
      %v791 = vmul.f32 1.0, %v790
      %v792 = vrcp.pop %v768
      %v793 = vmul.f32 1.0, %v792
      %v794 = vrcp.pop %v769
      %v795 = vmul.f32 1.0, %v794
      %v796 = vrcp.pop %v770
      %v797 = vmul.f32 1.0, %v796
      %v798 = vrcp.pop %v771
      %v799 = vmul.f32 1.0, %v798
      %v800 = vrcp.pop %v772
      %v801 = vmul.f32 1.0, %v800
      %v802 = vrcp.pop %v773
      %v803 = vmul.f32 1.0, %v802
      %v804 = vrcp.pop %v774
      %v805 = vmul.f32 1.0, %v804
      %v806 = vrcp.pop %v775
      %v807 = vmul.f32 1.0, %v806
      %808 = vst.msk [vmem:[%s275] sm:$0xff] %vm302, %v777
      %809 = vst.msk [vmem:[%s275 + $0x8] sm:$0xff] %vm302, %v779
      %810 = vst.msk [vmem:[%s275 + $0x10] sm:$0xff] %vm302, %v781
      %811 = vst.msk [vmem:[%s275 + $0x18] sm:$0xff] %vm302, %v783
      %812 = vst.msk [vmem:[%s275 + $0x20] sm:$0xff] %vm302, %v785
      %813 = vst.msk [vmem:[%s275 + $0x28] sm:$0xff] %vm302, %v787
      %814 = vst.msk [vmem:[%s275 + $0x30] sm:$0xff] %vm302, %v789
      %815 = vst.msk [vmem:[%s275 + $0x38] sm:$0xff] %vm302, %v791
      %816 = vst.msk [vmem:[%s275 + $0x40] sm:$0xff] %vm302, %v793
      %817 = vst.msk [vmem:[%s275 + $0x48] sm:$0xff] %vm302, %v795
      %818 = vst.msk [vmem:[%s275 + $0x50] sm:$0xff] %vm302, %v797
      %819 = vst.msk [vmem:[%s275 + $0x58] sm:$0xff] %vm302, %v799
      %820 = vst.msk [vmem:[%s275 + $0x60] sm:$0xff] %vm302, %v801
      %821 = vst.msk [vmem:[%s275 + $0x68] sm:$0xff] %vm302, %v803
      %822 = vst.msk [vmem:[%s275 + $0x70] sm:$0xff] %vm302, %v805
      %823 = vst.msk [vmem:[%s275 + $0x78] sm:$0xff] %vm302, %v807
      %s824 = smul.u32 16, %s17
      %p825 = scmp.lt.s32.totalorder %s824, 31
      %s826 = scalar_select %p825, %s824, 31
      %s827 = smul.addr %s826, 8
      %s828 = scalar_lea.vmem %s6, %s827
      // Predicated region
      $region45: #{tpu_custom_call.1} parent=43 // pred_check
        %p829 = pneg %p171
      $region46: #{tpu_custom_call.1} parent=43 // pred_check_branch
        %831 = sbr.rel (%p829) target = $region48
      $region47: #{tpu_custom_call.1} parent=43 // pred_region
        %s832 = smul.u32 16, %s17
      $region48: #{tpu_custom_call.1} parent=43 // pred_fallthru
        _
    $region44: #{tpu_custom_call.1} parent=5 // pred_fallthru
      _
    %p833 = scmp.le.s32.totalorder 2, %s12
    // Predicated region
    $region49: #{tpu_custom_call.1} parent=5 // pred_check
      %p834 = pneg %p833
    $region50: #{tpu_custom_call.1} parent=5 // pred_check_branch
      %836 = sbr.rel (%p834) target = $region52
    $region51: #{tpu_custom_call.1} parent=5 // pred_region
      %s837 = ssub.s32 %s12, 2
      // Predicated region
      $region53: #{tpu_custom_call.1} parent=51 // pred_check
        %p838 = pneg %p177
      $region54: #{tpu_custom_call.1} parent=51 // pred_check_branch
        %840 = sbr.rel (%p838) target = $region56
      $region55: #{tpu_custom_call.1} parent=51 // pred_region
        %s841 = smul.u32 16, %s18
        %p842 = scmp.lt.s32.totalorder %s841, 31
        %s843 = scalar_select %p842, %s841, 31
        %s844 = smul.addr %s843, 8
        %s845 = scalar_lea.vmem %s6, %s844
      $region56: #{tpu_custom_call.1} parent=51 // pred_fallthru
        _
    $region52: #{tpu_custom_call.1} parent=5 // pred_fallthru
      _
  $region6: #{tpu_custom_call.1} parent=0 // loop_footer
    %s16 = sadd.s32 1, %s12
  $region7: #{tpu_custom_call.1} parent=0 // loop_footer_branch
    %11 = sbr.rel target = $region3
  $region8: #{tpu_custom_call.1} parent=0 // loop_exit
    _

</llo_original>
